<compile_context>
chip_gen: v7x
topology: tpu7x:2x2x1
jax: 0.10.0
libtpu: 0.0.40
codegen_flags: <defaults>
</compile_context>

<pallas_src>
import functools

import jax
import jax.numpy as jnp
from jax import lax
from jax.experimental import pallas as pl
from jax.experimental.pallas import tpu as pltpu

LANES = 128


def _contrastive_kernel(temp_ref, dist_ref, label_ref, out_ref, *,
                        n, block_rows, lanes):
    i = pl.program_id(0)
    temp = temp_ref[0]                                # SMEM f32 scalar

    d = dist_ref[...].astype(jnp.float32)             # (block_rows, lanes)
    y = label_ref[...].astype(jnp.float32)            # (block_rows, lanes)

    hinge = jnp.maximum(temp - d, 0.0)
    term = 0.5 * (y * (d * d) + (1.0 - y) * (hinge * hinge))

    last = pl.num_programs(0) - 1

    # Interior tiles: plain sublane reduce, lane-dense (1,1,128) partial store.
    @pl.when(i < last)
    def _():
        out_ref[...] = jnp.sum(term, axis=0, keepdims=True)[None]

    # Last tile: mask any out-of-range elements (ragged rows past `rows`,
    # and/or tail elements past n when n % lanes != 0).
    @pl.when(i == last)
    def _():
        row = lax.broadcasted_iota(jnp.int32, (block_rows, lanes), 0)
        col = lax.broadcasted_iota(jnp.int32, (block_rows, lanes), 1)
        elem = (i * block_rows + row) * lanes + col    # global element index
        masked = jnp.where(elem < n, term, 0.0)
        out_ref[...] = jnp.sum(masked, axis=0, keepdims=True)[None]


def contrastive_loss(dist, label, temperature=1.0, *,
                     lanes=LANES, min_kernel_elems=65536):
    """Pallas TPU contrastive loss. dist/label: any (matching) shape/dtype."""
    assert dist.shape == label.shape, "dist and label must have the same shape"
    n = int(dist.size)
    assert n > 0

    # ---- Small-N fast path: launch/reshape overhead dwarfs the work --------
    if n < min_kernel_elems:
        d = jnp.ravel(dist).astype(jnp.float32)
        y = jnp.ravel(label).astype(jnp.float32)
        h = jnp.maximum(jnp.float32(temperature) - d, 0.0)
        return jnp.mean(0.5 * (y * (d * d) + (1.0 - y) * (h * h)))

    d_item = jnp.dtype(dist.dtype).itemsize
    l_item = jnp.dtype(label.dtype).itemsize
    min_item = min(d_item, l_item, 4)
    align = 8 * (4 // min_item)          # 8 f32, 16 bf16, 32 int8 sublanes

    rows = -(-n // lanes)

    # ---- Block sizing: ~2 MiB streamed per step, >= ~8 grid steps ----------
    bytes_per_row = lanes * (d_item + l_item)
    cap_rows = max(align, ((2 << 20) // bytes_per_row) // align * align)
    tgt_rows = -(-rows // 8)
    tgt_rows = max(align, ((tgt_rows + align - 1) // align) * align)
    block_rows = min(cap_rows, tgt_rows)
    num_tiles = -(-rows // block_rows)

    # ---- Layout: zero-copy reshape when lane-aligned; minimal pad otherwise
    df = jnp.ravel(dist)
    lf = jnp.ravel(label)
    pad = rows * lanes - n
    if pad:
        # Only when n % 128 != 0; pad values are masked out in-kernel.
        # TODO(synk): allow_input_fusion could elide this copy for ragged n.
        df = jnp.pad(df, (0, pad))
        lf = jnp.pad(lf, (0, pad))
    df = df.reshape(rows, lanes)
    lf = lf.reshape(rows, lanes)

    # ---- VMEM limit: input double-buffers + f32 intermediates + headroom ---
    streamed = 2 * block_rows * lanes * (d_item + l_item)
    f32_temps = 4 * block_rows * lanes * 4
    vmem_limit = int(min(32 << 20, streamed + f32_temps + (8 << 20)))

    kernel = functools.partial(_contrastive_kernel,
                               n=n, block_rows=block_rows, lanes=lanes)
    in_spec = pl.BlockSpec((block_rows, lanes), lambda i, temp_ref: (i, 0))

    temp_arr = jnp.asarray([temperature], dtype=jnp.float32)

    partials = pl.pallas_call(
        kernel,
        out_shape=jax.ShapeDtypeStruct((num_tiles, 1, lanes), jnp.float32),
        grid_spec=pltpu.PrefetchScalarGridSpec(
            num_scalar_prefetch=1,           # temperature -> SMEM scalar
            grid=(num_tiles,),
            in_specs=[in_spec, in_spec],
            out_specs=pl.BlockSpec((1, 1, lanes), lambda i, temp_ref: (i, 0, 0)),
        ),
        compiler_params=pltpu.CompilerParams(
            dimension_semantics=("parallel",),
            vmem_limit_bytes=vmem_limit,
        ),
    )(temp_arr, df, lf)

    # Tiny final cross-tile / cross-lane reduce + mean over original count.
    return jnp.sum(partials) / jnp.float32(n)


def contrastive_loss_ref(dist, label, temperature=1.0):
    d = jnp.ravel(dist).astype(jnp.float32)
    y = jnp.ravel(label).astype(jnp.float32)
    hinge = jnp.maximum(jnp.float32(temperature) - d, 0.0)
    return jnp.mean(0.5 * y * d ** 2 + 0.5 * (1.0 - y) * hinge ** 2)


if __name__ == "__main__":
    key = jax.random.PRNGKey(0)
    k1, k2, k3, k4, k5, k6 = jax.random.split(key, 6)

    # 1) Small batch (module-typical shape) -> fast path.
    B = 128
    dist_s = jnp.abs(jax.random.normal(k1, (B,), dtype=jnp.float32))
    label_s = jax.random.bernoulli(k2, 0.5, (B,)).astype(jnp.float32)
    out_s = jax.block_until_ready(contrastive_loss(dist_s, label_s, 1.0))
    ref_s = contrastive_loss_ref(dist_s, label_s, 1.0)
    assert jnp.allclose(out_s, ref_s, rtol=1e-5, atol=1e-6), (out_s, ref_s)

    # 2) Kernel path, ragged size (n % 128 != 0) exercises in-kernel masking.
    N1 = 70013
    dist_r = jnp.abs(jax.random.normal(k3, (N1,), dtype=jnp.float32))
    label_r = jax.random.bernoulli(k4, 0.5, (N1,)).astype(jnp.float32)
    out_r = jax.block_until_ready(contrastive_loss(dist_r, label_r, 0.7))
    ref_r = contrastive_loss_ref(dist_r, label_r, 0.7)
    assert jnp.allclose(out_r, ref_r, rtol=1e-4, atol=1e-6), (out_r, ref_r)

    # 3) Kernel path, lane-aligned size (n % 128 == 0) -> zero-copy feed.
    N2 = 98304
    dist_a = jnp.abs(jax.random.normal(k5, (N2,), dtype=jnp.float32))
    label_a = jax.random.bernoulli(k6, 0.5, (N2,)).astype(jnp.float32)
    out_a = jax.block_until_ready(contrastive_loss(dist_a, label_a, 1.0))
    ref_a = contrastive_loss_ref(dist_a, label_a, 1.0)
    assert jnp.allclose(out_a, ref_a, rtol=1e-4, atol=1e-6), (out_a, ref_a)

    print("KERNEL_OK")
</pallas_src>

<mosaic_0001>
module attributes {stable_mosaic.version = 11 : i64} {
  func.func @_contrastive_kernel(%arg0: i32, %arg1: memref<1xf32, #tpu.memory_space<smem>>, %arg2: memref<72x128xf32, #tpu.memory_space<vmem>>, %arg3: memref<72x128xf32, #tpu.memory_space<vmem>>, %arg4: memref<1x1x128xf32, #tpu.memory_space<vmem>>) attributes {dimension_semantics = [#tpu.dimension_semantics<parallel>], iteration_bounds = array<i64: 8>, scalar_prefetch = 1 : i64, scratch_operands = 0 : i64, tpu.core_type = #tpu.core_type<tc>, window_params = [{transform_indices = @transform_0, window_bounds = array<i64: 72, 128>}, {transform_indices = @transform_1, window_bounds = array<i64: 72, 128>}, {transform_indices = @transform_2, window_bounds = array<i64: 1, 1, 128>}]} {
    %c0 = arith.constant 0 : index
    %0 = memref.load %arg1[%c0] : memref<1xf32, #tpu.memory_space<smem>>
    %c0_0 = arith.constant 0 : index
    %c0_1 = arith.constant 0 : index
    %1 = vector.load %arg2[%c0_0, %c0_1] : memref<72x128xf32, #tpu.memory_space<vmem>>, vector<72x128xf32>
    %c0_2 = arith.constant 0 : index
    %c0_3 = arith.constant 0 : index
    %2 = vector.load %arg3[%c0_2, %c0_3] : memref<72x128xf32, #tpu.memory_space<vmem>>, vector<72x128xf32>
    %3 = vector.broadcast %0 : f32 to vector<72x128xf32>
    %4 = arith.subf %3, %1 : vector<72x128xf32>
    %cst = arith.constant 0.000000e+00 : f32
    %5 = vector.broadcast %cst : f32 to vector<72x128xf32>
    %6 = arith.maximumf %4, %5 : vector<72x128xf32>
    %7 = arith.mulf %1, %1 : vector<72x128xf32>
    %8 = arith.mulf %2, %7 : vector<72x128xf32>
    %cst_4 = arith.constant 1.000000e+00 : f32
    %9 = vector.broadcast %cst_4 : f32 to vector<72x128xf32>
    %10 = arith.subf %9, %2 : vector<72x128xf32>
    %11 = arith.mulf %6, %6 : vector<72x128xf32>
    %12 = arith.mulf %10, %11 : vector<72x128xf32>
    %13 = arith.addf %8, %12 : vector<72x128xf32>
    %cst_5 = arith.constant 5.000000e-01 : f32
    %14 = vector.broadcast %cst_5 : f32 to vector<72x128xf32>
    %15 = arith.mulf %14, %13 : vector<72x128xf32>
    %c7_i32 = arith.constant 7 : i32
    %16 = arith.cmpi slt, %arg0, %c7_i32 : i32
    %17 = arith.extui %16 : i1 to i32
    %c0_i32 = arith.constant 0 : i32
    %18 = arith.cmpi ne, %17, %c0_i32 : i32
    scf.if %18 {
      %cst_8 = arith.constant dense<0.000000e+00> : vector<128xf32>
      %22 = vector.multi_reduction <add>, %15, %cst_8 [0] : vector<72x128xf32> to vector<128xf32>
      %23 = vector.shape_cast %22 : vector<128xf32> to vector<1x128xf32>
      %24 = vector.shape_cast %23 : vector<1x128xf32> to vector<1x1x128xf32>
      %c0_9 = arith.constant 0 : index
      %c0_10 = arith.constant 0 : index
      %c0_11 = arith.constant 0 : index
      %25 = vector.load %arg4[%c0_9, %c0_10, %c0_11] : memref<1x1x128xf32, #tpu.memory_space<vmem>>, vector<1x1x128xf32>
      tpu.vector_store %arg4[%c0_9, %c0_10, %c0_11], %24 {strides = array<i32>} : memref<1x1x128xf32, #tpu.memory_space<vmem>>, vector<1x1x128xf32>,
    } else {
    }
    %c7_i32_6 = arith.constant 7 : i32
    %19 = arith.cmpi eq, %arg0, %c7_i32_6 : i32
    %20 = arith.extui %19 : i1 to i32
    %c0_i32_7 = arith.constant 0 : i32
    %21 = arith.cmpi ne, %20, %c0_i32_7 : i32
    scf.if %21 {
      %22 = tpu.iota {dimensions = array<i32: 0>} : vector<72x128xi32>
      %23 = tpu.iota {dimensions = array<i32: 1>} : vector<72x128xi32>
      %c72_i32 = arith.constant 72 : i32
      %24 = arith.muli %arg0, %c72_i32 : i32
      %25 = vector.broadcast %24 : i32 to vector<72x128xi32>
      %26 = arith.addi %25, %22 : vector<72x128xi32>
      %c128_i32 = arith.constant 128 : i32
      %27 = vector.broadcast %c128_i32 : i32 to vector<72x128xi32>
      %28 = arith.muli %26, %27 : vector<72x128xi32>
      %29 = arith.addi %28, %23 : vector<72x128xi32>
      %c70013_i32 = arith.constant 70013 : i32
      %30 = vector.broadcast %c70013_i32 : i32 to vector<72x128xi32>
      %31 = arith.cmpi slt, %29, %30 : vector<72x128xi32>
      %cst_8 = arith.constant 0.000000e+00 : f32
      %32 = vector.broadcast %cst_8 : f32 to vector<72x128xf32>
      %33 = arith.select %31, %15, %32 : vector<72x128xi1>, vector<72x128xf32>
      %cst_9 = arith.constant dense<0.000000e+00> : vector<128xf32>
      %34 = vector.multi_reduction <add>, %33, %cst_9 [0] : vector<72x128xf32> to vector<128xf32>
      %35 = vector.shape_cast %34 : vector<128xf32> to vector<1x128xf32>
      %36 = vector.shape_cast %35 : vector<1x128xf32> to vector<1x1x128xf32>
      %c0_10 = arith.constant 0 : index
      %c0_11 = arith.constant 0 : index
      %c0_12 = arith.constant 0 : index
      %37 = vector.load %arg4[%c0_10, %c0_11, %c0_12] : memref<1x1x128xf32, #tpu.memory_space<vmem>>, vector<1x1x128xf32>
      tpu.vector_store %arg4[%c0_10, %c0_11, %c0_12], %36 {strides = array<i32>} : memref<1x1x128xf32, #tpu.memory_space<vmem>>, vector<1x1x128xf32>,
    } else {
    }
    return
  }
  func.func @transform_0(%arg0: i32, %arg1: memref<1xf32, #tpu.memory_space<smem>>) -> (i32, i32) {
    %c0_i32 = arith.constant 0 : i32
    %c0_i32_0 = arith.constant 0 : i32
    return %arg0, %c0_i32 : i32, i32
  }
  func.func @transform_1(%arg0: i32, %arg1: memref<1xf32, #tpu.memory_space<smem>>) -> (i32, i32) {
    %c0_i32 = arith.constant 0 : i32
    %c0_i32_0 = arith.constant 0 : i32
    return %arg0, %c0_i32 : i32, i32
  }
  func.func @transform_2(%arg0: i32, %arg1: memref<1xf32, #tpu.memory_space<smem>>) -> (i32, i32, i32) {
    %c0_i32 = arith.constant 0 : i32
    %c0_i32_0 = arith.constant 0 : i32
    %c0_i32_1 = arith.constant 0 : i32
    return %arg0, %c0_i32, %c0_i32_0 : i32, i32, i32
  }
}

</mosaic_0001>

<llo_original>
// kernel: tpu_custom_call.1
$region0: #{tpu_custom_call.1}
  #allocation0 [shape = 'u32[]', space=smem, size = 0x4, offset = 0x4, fixed_abs, tag = 'smem constant byte address 0x4 - core index']
  #allocation1 [shape = 'u32[144,128]{1,0:T(1,128)}', space=vmem, size = 0x12000, scoped, tag = 'internal scratch']
  #allocation2 [shape = 's32[1]{0}', space=sflag, size = 0x4, scoped, tag = 'scoped memory for tpu_custom_call.1']
  #allocation3 [shape = 'f32[1]{0:T(128)S(6)}', space=smem, size = 0x200, scoped, tag = 'prefetched SMEM operand 0']
  %s0 = inlined_call_operand.<no memory space> [shape: f32[1], index: 0, kind: input, shape index: {}]
  %s1 = inlined_call_operand.hbm [shape: f32[547,128], index: 1, kind: input, shape index: {}]
  %s2 = inlined_call_operand.hbm [shape: f32[547,128], index: 2, kind: input, shape index: {}]
  %s3 = inlined_call_operand.hbm [shape: f32[8,1,128], index: 3, kind: output, shape index: {}]
  %s4 = sld [smem:[#allocation0]]
  $region57: #{tpu_custom_call.1} parent=0
    _
  %s6 = ssub.s32 1, %s4
  %s7 = scalar_select 0, %s6, %s4
  %8 = sst [smem:[#allocation3]] %s0
  $region1: #{tpu_custom_call.1} parent=0
    #allocation4 [shape = 'u8[73728]{0}', space=vmem, size = 0x12000, scoped, tag = 'input window, operand 1']
    #allocation5 [shape = 's32[2]{0}', space=sflag, size = 0x8, scoped, tag = 'scoped memory for tpu_custom_call.1']
    #allocation6 [shape = 's32[2]{0}', space=sflag, size = 0x8, scoped, tag = 'scoped memory for tpu_custom_call.1']
    #allocation7 [shape = 'u8[73728]{0}', space=vmem, size = 0x12000, scoped, tag = 'input window, operand 2']
    #allocation8 [shape = 's32[2]{0}', space=sflag, size = 0x8, scoped, tag = 'scoped memory for tpu_custom_call.1']
    #allocation9 [shape = 'u8[1024]{0}', space=vmem, size = 0x400, scoped, tag = 'output window, operand 0']
    %9 = vsyncpa [#allocation5], 0
    %s10 = scalar_lea.sflag [#allocation5], 1
    %11 = vsyncpa %s10, 0
    %12 = vsyncpa [#allocation8], 0
    %s13 = scalar_lea.sflag [#allocation8], 1
    %14 = vsyncpa %s13, 0
    %15 = vsyncpa [#allocation6], 0
    %s16 = scalar_lea.sflag [#allocation6], 1
    %17 = vsyncpa %s16, 0
    loop: start=0, step=1, limit=10
    $region2: #{tpu_custom_call.1} parent=1 // loop_pre_header
      _
    $region3: #{tpu_custom_call.1} parent=1 // loop_header
      %s19 = sphi 0, %s23
      %p20 = scmp.ge.s32.totalorder %s19, 10
      %s29 = sphi 0, %s31
      %s32 = sphi 0, %s29
      %s33 = sphi 0, %s32
      %s49 = sphi 0, %s33
      %s55 = sphi 0, %s57
      %s58 = sphi 0, %s55
      %s59 = sphi 0, %s58
      %s75 = sphi 0, %s59
      %s81 = sphi 0, %s83
      %s84 = sphi 0, %s81
      %s85 = sphi 0, %s84
      %s101 = sphi 0, %s85
    $region4: #{tpu_custom_call.1} parent=1 // loop_header_branch
      %22 = sbr.rel (%p20) target = $region8
    $region5: #{tpu_custom_call.1} parent=1 // loop_body
      %s24 = ssub.s32 %s19, 1
      %s25 = ssub.s32 %s19, 2
      %s26 = sadd.s32 %s19, 1
      %s27 = ssub.s32 %s19, %s26
      %p28 = scmp.eq.s32.totalorder %s27, 0
      %s30 = sadd.s32 %s29, 1
      %s31 = scalar_select %p28, %s29, %s30
      %p34 = pneg %p28
      %p35 = scmp.eq.s32.totalorder %s19, 7
      %p36 = por %p34, %p35
      %p37 = scmp.ne.s32.totalorder %s29, %s32
      %p38 = scmp.eq.s32.totalorder %s19, 0
      %p39 = por %p37, %p38
      %p40 = scmp.ne.s32.totalorder %s29, %s32
      %p41 = scmp.eq.s32.totalorder %s24, 7
      %p42 = por %p40, %p41
      %p43 = scmp.ne.s32.totalorder %s32, %s33
      %p44 = scmp.eq.s32.totalorder %s24, 0
      %p45 = por %p43, %p44
      %p46 = scmp.ne.s32.totalorder %s32, %s33
      %p47 = scmp.eq.s32.totalorder %s25, 7
      %p48 = por %p46, %p47
      %p50 = scmp.ne.s32.totalorder %s33, %s49
      %p51 = scmp.eq.s32.totalorder %s25, 0
      %p52 = por %p50, %p51
      %s53 = ssub.s32 %s19, %s26
      %p54 = scmp.eq.s32.totalorder %s53, 0
      %s56 = sadd.s32 %s55, 1
      %s57 = scalar_select %p54, %s55, %s56
      %p60 = pneg %p54
      %p61 = scmp.eq.s32.totalorder %s19, 7
      %p62 = por %p60, %p61
      %p63 = scmp.ne.s32.totalorder %s55, %s58
      %p64 = scmp.eq.s32.totalorder %s19, 0
      %p65 = por %p63, %p64
      %p66 = scmp.ne.s32.totalorder %s55, %s58
      %p67 = scmp.eq.s32.totalorder %s24, 7
      %p68 = por %p66, %p67
      %p69 = scmp.ne.s32.totalorder %s58, %s59
      %p70 = scmp.eq.s32.totalorder %s24, 0
      %p71 = por %p69, %p70
      %p72 = scmp.ne.s32.totalorder %s58, %s59
      %p73 = scmp.eq.s32.totalorder %s25, 7
      %p74 = por %p72, %p73
      %p76 = scmp.ne.s32.totalorder %s59, %s75
      %p77 = scmp.eq.s32.totalorder %s25, 0
      %p78 = por %p76, %p77
      %s79 = ssub.s32 %s19, %s26
      %p80 = scmp.eq.s32.totalorder %s79, 0
      %s82 = sadd.s32 %s81, 1
      %s83 = scalar_select %p80, %s81, %s82
      %p86 = pneg %p80
      %p87 = scmp.eq.s32.totalorder %s19, 7
      %p88 = por %p86, %p87
      %p89 = scmp.ne.s32.totalorder %s81, %s84
      %p90 = scmp.eq.s32.totalorder %s19, 0
      %p91 = por %p89, %p90
      %p92 = scmp.ne.s32.totalorder %s81, %s84
      %p93 = scmp.eq.s32.totalorder %s24, 7
      %p94 = por %p92, %p93
      %p95 = scmp.ne.s32.totalorder %s84, %s85
      %p96 = scmp.eq.s32.totalorder %s24, 0
      %p97 = por %p95, %p96
      %p98 = scmp.ne.s32.totalorder %s84, %s85
      %p99 = scmp.eq.s32.totalorder %s25, 7
      %p100 = por %p98, %p99
      %p102 = scmp.ne.s32.totalorder %s85, %s101
      %p103 = scmp.eq.s32.totalorder %s25, 0
      %p104 = por %p102, %p103
      %p105 = scmp.le.s32.totalorder 1, %s19
      %p106 = scmp.lt.s32.totalorder %s19, 9
      %p107 = pnand %p105, %p106
      %p108 = pneg %p107
      // Predicated region
      $region9: #{tpu_custom_call.1} parent=5 // pred_check
        _
      $region10: #{tpu_custom_call.1} parent=5 // pred_check_branch
        %110 = sbr.rel (%p107) target = $region12
      $region11: #{tpu_custom_call.1} parent=5 // pred_region
        %s111 = ssub.s32 %s19, 1
      $region12: #{tpu_custom_call.1} parent=5 // pred_fallthru
        _
      %p112 = scmp.lt.s32.totalorder %s19, 8
      // Predicated region
      $region13: #{tpu_custom_call.1} parent=5 // pred_check
        %p113 = pneg %p112
      $region14: #{tpu_custom_call.1} parent=5 // pred_check_branch
        %115 = sbr.rel (%p113) target = $region16
      $region15: #{tpu_custom_call.1} parent=5 // pred_region
        // Predicated region
        $region17: #{tpu_custom_call.1} parent=15 // pred_check
          %p116 = pneg %p39
        $region18: #{tpu_custom_call.1} parent=15 // pred_check_branch
          %118 = sbr.rel (%p116) target = $region20
        $region19: #{tpu_custom_call.1} parent=15 // pred_region
          %s119 = sand.u32 %s29, 1
          %s120 = scalar_lea.sflag [#allocation5], %s119
          %s121 = sand.u32 %s29, 1
          %s122 = smul.addr %s121, 72
          %s123 = scalar_lea.vmem [#allocation4], %s122
          %s124 = smul.u32 9, %s19
          %s125 = ssub.s32 69, %s124
          %p126 = scmp.lt.s32.totalorder %s125, 9
          %s127 = scalar_select %p126, %s125, 9
          %s128 = smul.u32 128, %s127
          %s130 = ssub.s32 1152, %s128
          %131 = vsyncadd %s120, %s130
          %p132 = scmp.ne.s32.totalorder 0, %s128
          %s133 = smul.addr %s124, 128
          %s134 = scalar_lea.hbm %s1, %s133
          %s135 = smul.u32 8, %s127
          %s136 = sshll.u32 %s123, 4
          %s137 = int_to_ptr.vmem [resolvable:$true] %s136
          %s138 = sshll.u32 %s135, 4
          %142 = dma.hbm_to_vmem [thread:$0]  (%p132), %s134, %s138, %s137, %s120, 128, 128, 8
        $region20: #{tpu_custom_call.1} parent=15 // pred_fallthru
          _
        // Predicated region
        $region21: #{tpu_custom_call.1} parent=15 // pred_check
          %p143 = pneg %p65
        $region22: #{tpu_custom_call.1} parent=15 // pred_check_branch
          %145 = sbr.rel (%p143) target = $region24
        $region23: #{tpu_custom_call.1} parent=15 // pred_region
          %s146 = sand.u32 %s55, 1
          %s147 = scalar_lea.sflag [#allocation8], %s146
          %s148 = sand.u32 %s55, 1
          %s149 = smul.addr %s148, 72
          %s150 = scalar_lea.vmem [#allocation7], %s149
          %s151 = smul.u32 9, %s19
          %s152 = ssub.s32 69, %s151
          %p153 = scmp.lt.s32.totalorder %s152, 9
          %s154 = scalar_select %p153, %s152, 9
          %s155 = smul.u32 128, %s154
          %s157 = ssub.s32 1152, %s155
          %158 = vsyncadd %s147, %s157
          %p159 = scmp.ne.s32.totalorder 0, %s155
          %s160 = smul.addr %s151, 128
          %s161 = scalar_lea.hbm %s2, %s160
          %s162 = smul.u32 8, %s154
          %s163 = sshll.u32 %s150, 4
          %s164 = int_to_ptr.vmem [resolvable:$true] %s163
          %s165 = sshll.u32 %s162, 4
          %169 = dma.hbm_to_vmem [thread:$0]  (%p159), %s161, %s165, %s164, %s147, 128, 128, 8
        $region24: #{tpu_custom_call.1} parent=15 // pred_fallthru
          _
      $region16: #{tpu_custom_call.1} parent=5 // pred_fallthru
        _
      %p170 = scmp.le.s32.totalorder 1, %s19
      %p171 = scmp.lt.s32.totalorder %s19, 9
      %p172 = pnand %p170, %p171
      %p173 = pneg %p172
      // Predicated region
      $region25: #{tpu_custom_call.1} parent=5 // pred_check
        _
      $region26: #{tpu_custom_call.1} parent=5 // pred_check_branch
        %175 = sbr.rel (%p172) target = $region28
      $region27: #{tpu_custom_call.1} parent=5 // pred_region
        %s176 = ssub.s32 %s19, 1
        %s177 = sand.u32 %s32, 1
        %s178 = scalar_lea.sflag [#allocation5], %s177
        %s179 = sand.u32 %s32, 1
        %s180 = smul.addr %s179, 72
        %s181 = scalar_lea.vmem [#allocation4], %s180
        // Predicated region
        $region29: #{tpu_custom_call.1} parent=27 // pred_check
          %p182 = pneg %p45
        $region30: #{tpu_custom_call.1} parent=27 // pred_check_branch
          %184 = sbr.rel (%p182) target = $region32
        $region31: #{tpu_custom_call.1} parent=27 // pred_region
          %185 = dma.done %s178, 1152
        $region32: #{tpu_custom_call.1} parent=27 // pred_fallthru
          _
        %s186 = sand.u32 %s58, 1
        %s187 = scalar_lea.sflag [#allocation8], %s186
        %s188 = sand.u32 %s58, 1
        %s189 = smul.addr %s188, 72
        %s190 = scalar_lea.vmem [#allocation7], %s189
        // Predicated region
        $region33: #{tpu_custom_call.1} parent=27 // pred_check
          %p191 = pneg %p71
        $region34: #{tpu_custom_call.1} parent=27 // pred_check_branch
          %193 = sbr.rel (%p191) target = $region36
        $region35: #{tpu_custom_call.1} parent=27 // pred_region
          %194 = dma.done %s187, 1152
        $region36: #{tpu_custom_call.1} parent=27 // pred_fallthru
          _
        %s195 = sand.u32 %s32, 1
        %s196 = scalar_lea.sflag [#allocation5], %s195
        %s197 = sand.u32 %s32, 1
        %s198 = smul.addr %s197, 72
        %s199 = scalar_lea.vmem [#allocation4], %s198
        %p200 = pneg %p45
        %p201 = pneg %p42
        %s202 = sand.u32 %s58, 1
        %s203 = scalar_lea.sflag [#allocation8], %s202
        %s204 = sand.u32 %s58, 1
        %s205 = smul.addr %s204, 72
        %s206 = scalar_lea.vmem [#allocation7], %s205
        %p207 = pneg %p71
        %p208 = pneg %p68
        %p209 = pneg %p97
        %p210 = pneg %p94
        %s211 = sand.u32 %s84, 1
        %s212 = scalar_lea.sflag [#allocation6], %s211
        %s213 = sand.u32 %s84, 1
        %s214 = scalar_lea.vmem [#allocation9], %s213
        %s215 = smul.u32 9, %s24
        %s216 = ssub.s32 69, %s215
        %p217 = scmp.lt.s32.totalorder %s216, 9
        %s218 = scalar_select %p217, %s216, 9
        %s219 = smul.u32 128, %s218
        %s220 = smul.u32 9, %s24
        %s221 = ssub.s32 69, %s220
        %p222 = scmp.lt.s32.totalorder %s221, 9
        %s223 = scalar_select %p222, %s221, 9
        %s224 = smul.u32 128, %s223
        %s225 = sld [smem:[#allocation3]]
        %v226 = vld [vmem:[%s181] sm:$0xff]
        %v227 = vld [vmem:[%s181 + $0x8] sm:$0xff]
        %v228 = vld [vmem:[%s181 + $0x10] sm:$0xff]
        %v229 = vld [vmem:[%s181 + $0x18] sm:$0xff]
        %v230 = vld [vmem:[%s181 + $0x20] sm:$0xff]
        %v231 = vld [vmem:[%s181 + $0x28] sm:$0xff]
        %v232 = vld [vmem:[%s181 + $0x30] sm:$0xff]
        %v233 = vld [vmem:[%s181 + $0x38] sm:$0xff]
        %v234 = vld [vmem:[%s181 + $0x40] sm:$0xff]
        %v235 = vld [vmem:[%s190] sm:$0xff]
        %v236 = vld [vmem:[%s190 + $0x8] sm:$0xff]
        %v237 = vld [vmem:[%s190 + $0x10] sm:$0xff]
        %v238 = vld [vmem:[%s190 + $0x18] sm:$0xff]
        %v239 = vld [vmem:[%s190 + $0x20] sm:$0xff]
        %v240 = vld [vmem:[%s190 + $0x28] sm:$0xff]
        %v241 = vld [vmem:[%s190 + $0x30] sm:$0xff]
        %v242 = vld [vmem:[%s190 + $0x38] sm:$0xff]
        %v243 = vld [vmem:[%s190 + $0x40] sm:$0xff]
        %v244 = vstv %s225
        %v245 = vsub.f32 %v244, %v226
        %v246 = vsub.f32 %v244, %v227
        %v247 = vsub.f32 %v244, %v228
        %v248 = vsub.f32 %v244, %v229
        %v249 = vsub.f32 %v244, %v230
        %v250 = vsub.f32 %v244, %v231
        %v251 = vsub.f32 %v244, %v232
        %v252 = vsub.f32 %v244, %v233
        %v253 = vsub.f32 %v244, %v234
        %v254 = vmax.f32 %v245, 0.0
        %v255 = vmax.f32 %v246, 0.0
        %v256 = vmax.f32 %v247, 0.0
        %v257 = vmax.f32 %v248, 0.0
        %v258 = vmax.f32 %v249, 0.0
        %v259 = vmax.f32 %v250, 0.0
        %v260 = vmax.f32 %v251, 0.0
        %v261 = vmax.f32 %v252, 0.0
        %v262 = vmax.f32 %v253, 0.0
        %v263 = vmul.f32 %v226, %v226
        %v264 = vmul.f32 %v227, %v227
        %v265 = vmul.f32 %v228, %v228
        %v266 = vmul.f32 %v229, %v229
        %v267 = vmul.f32 %v230, %v230
        %v268 = vmul.f32 %v231, %v231
        %v269 = vmul.f32 %v232, %v232
        %v270 = vmul.f32 %v233, %v233
        %v271 = vmul.f32 %v234, %v234
        %v272 = vmul.f32 %v235, %v263
        %v273 = vmul.f32 %v236, %v264
        %v274 = vmul.f32 %v237, %v265
        %v275 = vmul.f32 %v238, %v266
        %v276 = vmul.f32 %v239, %v267
        %v277 = vmul.f32 %v240, %v268
        %v278 = vmul.f32 %v241, %v269
        %v279 = vmul.f32 %v242, %v270
        %v280 = vmul.f32 %v243, %v271
        %v281 = vsub.f32 1.0, %v235
        %v282 = vsub.f32 1.0, %v236
        %v283 = vsub.f32 1.0, %v237
        %v284 = vsub.f32 1.0, %v238
        %v285 = vsub.f32 1.0, %v239
        %v286 = vsub.f32 1.0, %v240
        %v287 = vsub.f32 1.0, %v241
        %v288 = vsub.f32 1.0, %v242
        %v289 = vsub.f32 1.0, %v243
        %v290 = vmul.f32 %v254, %v254
        %v291 = vmul.f32 %v255, %v255
        %v292 = vmul.f32 %v256, %v256
        %v293 = vmul.f32 %v257, %v257
        %v294 = vmul.f32 %v258, %v258
        %v295 = vmul.f32 %v259, %v259
        %v296 = vmul.f32 %v260, %v260
        %v297 = vmul.f32 %v261, %v261
        %v298 = vmul.f32 %v262, %v262
        %v299 = vmul.f32 %v281, %v290
        %v300 = vmul.f32 %v282, %v291
        %v301 = vmul.f32 %v283, %v292
        %v302 = vmul.f32 %v284, %v293
        %v303 = vmul.f32 %v285, %v294
        %v304 = vmul.f32 %v286, %v295
        %v305 = vmul.f32 %v287, %v296
        %v306 = vmul.f32 %v288, %v297
        %v307 = vmul.f32 %v289, %v298
        %v308 = vadd.f32 %v272, %v299
        %v309 = vadd.f32 %v273, %v300
        %v310 = vadd.f32 %v274, %v301
        %v311 = vadd.f32 %v275, %v302
        %v312 = vadd.f32 %v276, %v303
        %v313 = vadd.f32 %v277, %v304
        %v314 = vadd.f32 %v278, %v305
        %v315 = vadd.f32 %v279, %v306
        %v316 = vadd.f32 %v280, %v307
        %v317 = vmul.f32 %v308, 0.5
        %v318 = vmul.f32 %v309, 0.5
        %v319 = vmul.f32 %v310, 0.5
        %v320 = vmul.f32 %v311, 0.5
        %v321 = vmul.f32 %v312, 0.5
        %v322 = vmul.f32 %v313, 0.5
        %v323 = vmul.f32 %v314, 0.5
        %v324 = vmul.f32 %v315, 0.5
        %v325 = vmul.f32 %v316, 0.5
        %p326 = scmp.lt.s32.totalorder %s24, 7
        // Predicated region
        $region37: #{tpu_custom_call.1} parent=27 // pred_check
          %p327 = pneg %p326
        $region38: #{tpu_custom_call.1} parent=27 // pred_check_branch
          %329 = sbr.rel (%p327) target = $region40
        $region39: #{tpu_custom_call.1} parent=27 // pred_region
          %v330 = vadd.f32 %v317, %v318
          %v331 = vadd.f32 %v330, %v319
          %v332 = vadd.f32 %v331, %v320
          %v333 = vadd.f32 %v332, %v321
          %v334 = vadd.f32 %v333, %v322
          %v335 = vadd.f32 %v334, %v323
          %v336 = vadd.f32 %v335, %v324
          %v337 = vadd.f32 %v336, %v325
          %v338 = vrot.slane %v337, 4
          %v339 = vadd.f32 %v337, %v338
          %v340 = vrot.slane %v339, 2
          %v341 = vadd.f32 %v339, %v340
          %v342 = vrot.slane %v341, 1
          %v343 = vadd.f32 %v341, %v342
          %344 = vst [vmem:[%s214] sm:$0x1] %v343
        $region40: #{tpu_custom_call.1} parent=27 // pred_fallthru
          _
        %p345 = scmp.eq.s32.totalorder %s24, 7
        // Predicated region
        $region41: #{tpu_custom_call.1} parent=27 // pred_check
          %p346 = pneg %p345
        $region42: #{tpu_custom_call.1} parent=27 // pred_check_branch
          %348 = sbr.rel (%p346) target = $region44
        $region43: #{tpu_custom_call.1} parent=27 // pred_region
          %v349 = vlaneseq
          %v350 = vshrl.u32 %v349, 7
          %v351 = vadd.s32 %v350, 8
          %v352 = vadd.s32 %v350, 16
          %v353 = vadd.s32 %v350, 24
          %v354 = vadd.s32 %v350, 32
          %v355 = vadd.s32 %v350, 40
          %v356 = vadd.s32 %v350, 48
          %v357 = vadd.s32 %v350, 56
          %v358 = vadd.s32 %v350, 64
          %v359 = vlaneseq
          %v360 = vand.u32 %v359, 127
          %s361 = smul.u32 %s24, 72
          %v362 = vstv %s361
          %v363 = vadd.s32 %v362, %v350
          %v364 = vadd.s32 %v362, %v351
          %v365 = vadd.s32 %v362, %v352
          %v366 = vadd.s32 %v362, %v353
          %v367 = vadd.s32 %v362, %v354
          %v368 = vadd.s32 %v362, %v355
          %v369 = vadd.s32 %v362, %v356
          %v370 = vadd.s32 %v362, %v357
          %v371 = vadd.s32 %v362, %v358
          %v372 = vmul.u32 %v363, 128
          %v373 = vmul.u32 %v364, 128
          %v374 = vmul.u32 %v365, 128
          %v375 = vmul.u32 %v366, 128
          %v376 = vmul.u32 %v367, 128
          %v377 = vmul.u32 %v368, 128
          %v378 = vmul.u32 %v369, 128
          %v379 = vmul.u32 %v370, 128
          %v380 = vmul.u32 %v371, 128
          %v381 = vadd.s32 %v372, %v360
          %v382 = vadd.s32 %v373, %v360
          %v383 = vadd.s32 %v374, %v360
          %v384 = vadd.s32 %v375, %v360
          %v385 = vadd.s32 %v376, %v360
          %v386 = vadd.s32 %v377, %v360
          %v387 = vadd.s32 %v378, %v360
          %v388 = vadd.s32 %v379, %v360
          %v389 = vadd.s32 %v380, %v360
          %vm390 = vcmp.lt.s32.totalorder %v381, 70013
          %vm391 = vcmp.lt.s32.totalorder %v382, 70013
          %vm392 = vcmp.lt.s32.totalorder %v383, 70013
          %vm393 = vcmp.lt.s32.totalorder %v384, 70013
          %vm394 = vcmp.lt.s32.totalorder %v385, 70013
          %vm395 = vcmp.lt.s32.totalorder %v386, 70013
          %vm396 = vcmp.lt.s32.totalorder %v387, 70013
          %vm397 = vcmp.lt.s32.totalorder %v388, 70013
          %vm398 = vcmp.lt.s32.totalorder %v389, 70013
          %v399 = vsel %vm390, %v317, 0.0
          %v400 = vsel %vm391, %v318, 0.0
          %v401 = vsel %vm392, %v319, 0.0
          %v402 = vsel %vm393, %v320, 0.0
          %v403 = vsel %vm394, %v321, 0.0
          %v404 = vsel %vm395, %v322, 0.0
          %v405 = vsel %vm396, %v323, 0.0
          %v406 = vsel %vm397, %v324, 0.0
          %v407 = vsel %vm398, %v325, 0.0
          %v408 = vadd.f32 %v399, %v400
          %v409 = vadd.f32 %v408, %v401
          %v410 = vadd.f32 %v409, %v402
          %v411 = vadd.f32 %v410, %v403
          %v412 = vadd.f32 %v411, %v404
          %v413 = vadd.f32 %v412, %v405
          %v414 = vadd.f32 %v413, %v406
          %v415 = vadd.f32 %v414, %v407
          %v416 = vrot.slane %v415, 4
          %v417 = vadd.f32 %v415, %v416
          %v418 = vrot.slane %v417, 2
          %v419 = vadd.f32 %v417, %v418
          %v420 = vrot.slane %v419, 1
          %v421 = vadd.f32 %v419, %v420
          %422 = vst [vmem:[%s214] sm:$0x1] %v421
        $region44: #{tpu_custom_call.1} parent=27 // pred_fallthru
          _
        %s423 = sand.u32 %s84, 1
        %s424 = scalar_lea.sflag [#allocation6], %s423
        %s425 = sand.u32 %s84, 1
        %s426 = scalar_lea.vmem [#allocation9], %s425
        // Predicated region
        $region45: #{tpu_custom_call.1} parent=27 // pred_check
          %p427 = pneg %p94
        $region46: #{tpu_custom_call.1} parent=27 // pred_check_branch
          %429 = sbr.rel (%p427) target = $region48
        $region47: #{tpu_custom_call.1} parent=27 // pred_region
          %s431 = ssub.s32 16, 16
          %432 = vsyncadd %s424, %s431
          %s433 = smul.addr %s24, 16
          %s434 = scalar_lea.hbm %s3, %s433
          %s436 = sshll.u32 %s426, 4
          %s437 = int_to_ptr.vmem [resolvable:$true] %s436
          %439 = dma.vmem_to_hbm [thread:$0]  %s437, 16, %s434, %s424
        $region48: #{tpu_custom_call.1} parent=27 // pred_fallthru
          _
      $region28: #{tpu_custom_call.1} parent=5 // pred_fallthru
        _
      %p440 = scmp.le.s32.totalorder 2, %s19
      // Predicated region
      $region49: #{tpu_custom_call.1} parent=5 // pred_check
        %p441 = pneg %p440
      $region50: #{tpu_custom_call.1} parent=5 // pred_check_branch
        %443 = sbr.rel (%p441) target = $region52
      $region51: #{tpu_custom_call.1} parent=5 // pred_region
        %s444 = ssub.s32 %s19, 2
        // Predicated region
        $region53: #{tpu_custom_call.1} parent=51 // pred_check
          %p445 = pneg %p100
        $region54: #{tpu_custom_call.1} parent=51 // pred_check_branch
          %447 = sbr.rel (%p445) target = $region56
        $region55: #{tpu_custom_call.1} parent=51 // pred_region
          %s448 = sand.u32 %s85, 1
          %s449 = scalar_lea.sflag [#allocation6], %s448
          %s450 = sand.u32 %s85, 1
          %s451 = scalar_lea.vmem [#allocation9], %s450
          %452 = dma.done %s449, 16
        $region56: #{tpu_custom_call.1} parent=51 // pred_fallthru
          _
      $region52: #{tpu_custom_call.1} parent=5 // pred_fallthru
        _
    $region6: #{tpu_custom_call.1} parent=1 // loop_footer
      %s23 = sadd.s32 1, %s19
    $region7: #{tpu_custom_call.1} parent=1 // loop_footer_branch
      %18 = sbr.rel target = $region3
    $region8: #{tpu_custom_call.1} parent=1 // loop_exit
      _
    %453 = vsyncpa [#allocation5], 1
    %s454 = scalar_lea.sflag [#allocation5], 1
    %455 = vsyncpa %s454, 1
    %456 = vsyncpa [#allocation8], 1
    %s457 = scalar_lea.sflag [#allocation8], 1
    %458 = vsyncpa %s457, 1
    %459 = vsyncpa [#allocation6], 1
    %s460 = scalar_lea.sflag [#allocation6], 1
    %461 = vsyncpa %s460, 1

</llo_original>
